<compile_context>
chip_gen: v6e
topology: v6e:2x2x1
jax: 0.10.0
libtpu: 0.0.40
codegen_flags: <defaults>
</compile_context>

<pallas_src>
import functools
import math

import jax
import jax.numpy as jnp
from jax.experimental import pallas as pl
from jax.experimental.pallas import tpu as pltpu

LANE = 128


def _round_up(x, m):
    return ((x + m - 1) // m) * m


def _vmem_capacity_bytes():
    """Generation-aware VMEM capacity (falls back to the smallest, v7x's 64 MiB)."""
    try:
        info = pltpu.get_tpu_info()
        cap = getattr(info, "vmem_capacity_bytes", None)
        if cap:
            return int(cap)
    except Exception:
        pass
    return 64 * 1024 * 1024


def _mlp_kernel(x_ref, w1_ref, b1_ref, w2_ref, b2_ref, w3_ref, b3_ref, out_ref):
    """Fused 3-layer MLP: relu(relu(x@W1+b1)@W2+b2)@W3+b3 (bf16 MXU, f32 acc)."""
    # Cast x to bf16 in-kernel (VPU, hidden under DMA/MXU slack) instead of a
    # separate wrapper-side XLA cast pass over HBM.
    x = x_ref[...].astype(jnp.bfloat16)
    h1 = jnp.dot(x, w1_ref[...], preferred_element_type=jnp.float32) + b1_ref[...]
    h1 = jnp.maximum(h1, 0.0).astype(jnp.bfloat16)
    h2 = jnp.dot(h1, w2_ref[...], preferred_element_type=jnp.float32) + b2_ref[...]
    h2 = jnp.maximum(h2, 0.0).astype(jnp.bfloat16)
    y = jnp.dot(h2, w3_ref[...], preferred_element_type=jnp.float32) + b3_ref[...]
    nb = out_ref.shape[1]                       # real (unpadded) logit width
    out_ref[...] = y[:, :nb].astype(out_ref.dtype)


def prepare_params(params):
    """One-time (outside the hot path) lane padding to 128 + bf16 weight cast."""
    w1, b1 = params["w1"], params["b1"]
    w2, b2 = params["w2"], params["b2"]
    w3, b3 = params["w3"], params["b3"]
    h1, h2, nb = w1.shape[1], w2.shape[1], w3.shape[1]
    h1p, h2p, nbp = _round_up(h1, LANE), _round_up(h2, LANE), _round_up(nb, LANE)

    def pad_w(w, rows, cols):
        return jnp.pad(
            w, ((0, rows - w.shape[0]), (0, cols - w.shape[1]))
        ).astype(jnp.bfloat16)

    def pad_b(b, cols):
        b = b.reshape(1, -1)                    # accept PyTorch-style 1-D bias too
        return jnp.pad(b, ((0, 0), (0, cols - b.shape[1]))).astype(jnp.float32)

    return {
        "w1": pad_w(w1, w1.shape[0], h1p), "b1": pad_b(b1, h1p),
        "w2": pad_w(w2, h1p, h2p),         "b2": pad_b(b2, h2p),
        "w3": pad_w(w3, h2p, nbp),         "b3": pad_b(b3, nbp),
        "nb": nb,
    }


def batch_discriminator_forward(x, prepared, *, input_size, tissue_size,
                                tm=1024, out_dtype=jnp.bfloat16):
    """Pallas implementation of BatchDiscriminator.forward.

    x: any shape whose elements reshape to (-1, input_size + tissue_size)
    prepared: output of prepare_params (lane-padded bf16 weights, f32 biases)
    out_dtype: logits dtype (bf16 by default; pass jnp.float32 if the loss needs it)
    """
    d_in = input_size + tissue_size
    x2d = x.reshape(-1, d_in)            # x.view(-1, D_in); keep incoming dtype
    n = x2d.shape[0]
    x_bytes = jnp.dtype(x2d.dtype).itemsize
    o_bytes = jnp.dtype(out_dtype).itemsize

    w1, b1 = prepared["w1"], prepared["b1"]
    w2, b2 = prepared["w2"], prepared["b2"]
    w3, b3 = prepared["w3"], prepared["b3"]
    nb = prepared["nb"]
    h1p, h2p, nbp = w1.shape[1], w2.shape[1], w3.shape[1]

    # Row-tile selection:
    #  * tiny n      -> single full-extent tile (no (8,128) issue: block == array dim)
    #  * moderate n  -> >= 2 grid steps so v7x's 2 TensorCores both get work
    #  * large n     -> tm (default 1024; per-step overhead amortized, ~85% HBM roofline)
    tm = _round_up(max(tm, 8), 8)
    if n <= 8:
        tm_eff = n
    elif n <= 2 * tm:
        tm_eff = _round_up(pl.cdiv(n, 2), 8)
    else:
        tm_eff = tm
    grid_m = pl.cdiv(n, tm_eff)
    # Ragged last tile: Pallas boundary handling reads the OOB rows as garbage
    # (rows are independent, so no contamination) and only writes back the
    # valid output rows. No jnp.pad HBM copy of x.

    # Advisory cost estimate for XLA's scheduler.
    weight_bytes = (w1.size + w2.size + w3.size) * 2
    bias_bytes = (b1.size + b2.size + b3.size) * 4
    cost = pl.CostEstimate(
        flops=2 * n * (d_in * h1p + h1p * h2p + h2p * nbp),
        transcendentals=0,
        bytes_accessed=x2d.size * x_bytes + weight_bytes + bias_bytes + n * nb * o_bytes,
    )

    # VMEM budget: double-buffered x/out row tiles + grid-invariant
    # (double-buffered) weights/biases + f32 intermediates; clamp to ~75% of the
    # chip generation's physical VMEM (128 MiB v5e/v6e, 64 MiB v7x).
    # NOTE / TODO(synk): for genomics-scale d_in (tens of thousands of features),
    # add an "arbitrary" K grid axis with an f32 acc scratch for layer 1 instead
    # of loading a full (tm, d_in) x tile and W1 whole.
    vmem_est = (
        2 * (tm_eff * d_in * x_bytes + tm_eff * nb * o_bytes)
        + 2 * (weight_bytes + bias_bytes)
        + 4 * tm_eff * (h1p + h2p + nbp)
    )
    vmem_limit = int(min(max(2 * vmem_est, 32 * 1024 * 1024),
                         int(0.75 * _vmem_capacity_bytes())))

    out = pl.pallas_call(
        _mlp_kernel,
        out_shape=jax.ShapeDtypeStruct((n, nb), out_dtype),
        grid_spec=pltpu.PrefetchScalarGridSpec(
            num_scalar_prefetch=0,
            grid=(grid_m,),
            in_specs=[
                pl.BlockSpec((tm_eff, d_in), lambda i: (i, 0)),   # x row tile (native dtype)
                pl.BlockSpec((d_in, h1p), lambda i: (0, 0)),      # W1 (full, bf16)
                pl.BlockSpec((1, h1p), lambda i: (0, 0)),         # b1 (f32)
                pl.BlockSpec((h1p, h2p), lambda i: (0, 0)),       # W2 (full, bf16)
                pl.BlockSpec((1, h2p), lambda i: (0, 0)),         # b2 (f32)
                pl.BlockSpec((h2p, nbp), lambda i: (0, 0)),       # W3 (full, bf16)
                pl.BlockSpec((1, nbp), lambda i: (0, 0)),         # b3 (f32)
            ],
            # Narrow (real-width) output block: ~12.8x less writeback than a
            # 128-lane padded f32 output and no trailing slice op.
            out_specs=pl.BlockSpec((tm_eff, nb), lambda i: (i, 0)),
        ),
        compiler_params=pltpu.CompilerParams(
            dimension_semantics=("parallel",),
            vmem_limit_bytes=vmem_limit,
        ),
        cost_estimate=cost,
    )(x2d, w1, b1, w2, b2, w3, b3)

    return out


def init_params(key, input_size, hl1_size, hl2_size, batch_size, tissue_size):
    """Deterministic init matching nn.Linear's U(-1/sqrt(fan_in), 1/sqrt(fan_in))."""
    d_in = input_size + tissue_size
    dims = [(d_in, hl1_size), (hl1_size, hl2_size), (hl2_size, batch_size)]
    params = {}
    keys = jax.random.split(key, 2 * len(dims))
    for li, (fi, fo) in enumerate(dims):
        bound = 1.0 / math.sqrt(fi)
        w = jax.random.uniform(keys[2 * li], (fi, fo), jnp.float32, -bound, bound)
        b = jax.random.uniform(keys[2 * li + 1], (1, fo), jnp.float32, -bound, bound)
        params[f"w{li + 1}"] = w
        params[f"b{li + 1}"] = b
    return params


def _reference_forward(x, params, input_size, tissue_size, out_dtype=jnp.bfloat16):
    """Plain-JAX reference mirroring the kernel's bf16 quantization choices."""
    d_in = input_size + tissue_size
    h = x.reshape(-1, d_in).astype(jnp.bfloat16)
    w1 = params["w1"].astype(jnp.bfloat16)
    w2 = params["w2"].astype(jnp.bfloat16)
    w3 = params["w3"].astype(jnp.bfloat16)
    h1 = jnp.dot(h, w1, preferred_element_type=jnp.float32) + params["b1"]
    h1 = jnp.maximum(h1, 0.0).astype(jnp.bfloat16)
    h2 = jnp.dot(h1, w2, preferred_element_type=jnp.float32) + params["b2"]
    h2 = jnp.maximum(h2, 0.0).astype(jnp.bfloat16)
    y = jnp.dot(h2, w3, preferred_element_type=jnp.float32) + params["b3"]
    return y.astype(out_dtype)


if __name__ == "__main__":
    # Small shapes consistent with the module's forward.
    input_size = 32
    hl1_size = 16
    hl2_size = 8
    batch_size = 10     # number of output classes ("batches" to discriminate)
    tissue_size = 2

    key = jax.random.PRNGKey(0)
    pkey, xkey1, xkey2 = jax.random.split(key, 3)
    params = init_params(pkey, input_size, hl1_size, hl2_size, batch_size, tissue_size)
    prepared = prepare_params(params)

    fwd = functools.partial(
        batch_discriminator_forward,
        input_size=input_size,
        tissue_size=tissue_size,
    )

    # Test 1: tiny N, single full-extent tile.
    n1 = 8
    x1 = jax.random.normal(xkey1, (n1, input_size + tissue_size), dtype=jnp.float32)
    y1 = jax.block_until_ready(fwd(x1, prepared))
    y1_ref = _reference_forward(x1, params, input_size, tissue_size)
    assert y1.shape == (n1, batch_size), y1.shape
    assert y1.dtype == jnp.bfloat16, y1.dtype
    assert jnp.allclose(y1.astype(jnp.float32), y1_ref.astype(jnp.float32),
                        atol=3e-2, rtol=3e-2), "mismatch (single-tile) vs reference"

    # Test 2: multi-tile row grid with a ragged final tile (no jnp.pad of x).
    n2 = 20
    x2 = jax.random.normal(xkey2, (n2, input_size + tissue_size), dtype=jnp.float32)
    y2 = jax.block_until_ready(fwd(x2, prepared, tm=8))
    y2_ref = _reference_forward(x2, params, input_size, tissue_size)
    assert y2.shape == (n2, batch_size), y2.shape
    assert jnp.allclose(y2.astype(jnp.float32), y2_ref.astype(jnp.float32),
                        atol=3e-2, rtol=3e-2), "mismatch (ragged multi-tile) vs reference"

    # Test 3: moderate N hits the ">= 2 grid steps" branch (v7x megacore sharding).
    n3 = 24
    x3 = jax.random.normal(xkey1, (n3, input_size + tissue_size), dtype=jnp.float32)
    y3 = jax.block_until_ready(fwd(x3, prepared))
    y3_ref = _reference_forward(x3, params, input_size, tissue_size)
    assert y3.shape == (n3, batch_size), y3.shape
    assert jnp.allclose(y3.astype(jnp.float32), y3_ref.astype(jnp.float32),
                        atol=3e-2, rtol=3e-2), "mismatch (two-step grid) vs reference"

    print("KERNEL_OK")
</pallas_src>

<mosaic_0001>
module attributes {stable_mosaic.version = 11 : i64} {
  func.func @_mlp_kernel(%arg0: i32, %arg1: memref<8x34xf32, #tpu.memory_space<vmem>>, %arg2: memref<34x128xbf16, #tpu.memory_space<vmem>>, %arg3: memref<1x128xf32, #tpu.memory_space<vmem>>, %arg4: memref<128x128xbf16, #tpu.memory_space<vmem>>, %arg5: memref<1x128xf32, #tpu.memory_space<vmem>>, %arg6: memref<128x128xbf16, #tpu.memory_space<vmem>>, %arg7: memref<1x128xf32, #tpu.memory_space<vmem>>, %arg8: memref<8x10xbf16, #tpu.memory_space<vmem>>) attributes {dimension_semantics = [#tpu.dimension_semantics<parallel>], iteration_bounds = array<i64: 1>, scalar_prefetch = 0 : i64, scratch_operands = 0 : i64, tpu.core_type = #tpu.core_type<tc>, window_params = [{transform_indices = @transform_0, window_bounds = array<i64: 8, 34>}, {pipeline_mode = #tpu.pipeline_mode<synchronous>, transform_indices = @transform_1, window_bounds = array<i64: 34, 128>}, {pipeline_mode = #tpu.pipeline_mode<synchronous>, transform_indices = @transform_2, window_bounds = array<i64: 1, 128>}, {pipeline_mode = #tpu.pipeline_mode<synchronous>, transform_indices = @transform_3, window_bounds = array<i64: 128, 128>}, {pipeline_mode = #tpu.pipeline_mode<synchronous>, transform_indices = @transform_4, window_bounds = array<i64: 1, 128>}, {pipeline_mode = #tpu.pipeline_mode<synchronous>, transform_indices = @transform_5, window_bounds = array<i64: 128, 128>}, {pipeline_mode = #tpu.pipeline_mode<synchronous>, transform_indices = @transform_6, window_bounds = array<i64: 1, 128>}, {transform_indices = @transform_7, window_bounds = array<i64: 8, 10>}]} {
    %c0 = arith.constant 0 : index
    %c0_0 = arith.constant 0 : index
    %0 = vector.load %arg1[%c0, %c0_0] : memref<8x34xf32, #tpu.memory_space<vmem>>, vector<8x34xf32>
    %1 = arith.truncf %0 : vector<8x34xf32> to vector<8x34xbf16>
    %c0_1 = arith.constant 0 : index
    %c0_2 = arith.constant 0 : index
    %2 = vector.load %arg2[%c0_1, %c0_2] : memref<34x128xbf16, #tpu.memory_space<vmem>>, vector<34x128xbf16>
    %cst = arith.constant dense<0.000000e+00> : vector<8x128xf32>
    %3 = tpu.matmul %1, %2, %cst {dimension_numbers = #tpu.dot_dimension_numbers<[1], [0], [0], [1], [0, 0, 1, 1], [], []>} : vector<8x34xbf16>, vector<34x128xbf16>, vector<8x128xf32> -> vector<8x128xf32>
    %c0_3 = arith.constant 0 : index
    %c0_4 = arith.constant 0 : index
    %4 = vector.load %arg3[%c0_3, %c0_4] : memref<1x128xf32, #tpu.memory_space<vmem>>, vector<1x128xf32>
    %5 = vector.broadcast %4 : vector<1x128xf32> to vector<8x128xf32>
    %6 = arith.addf %3, %5 : vector<8x128xf32>
    %cst_5 = arith.constant 0.000000e+00 : f32
    %7 = vector.broadcast %cst_5 : f32 to vector<8x128xf32>
    %8 = arith.maximumf %6, %7 : vector<8x128xf32>
    %9 = arith.truncf %8 : vector<8x128xf32> to vector<8x128xbf16>
    %c0_6 = arith.constant 0 : index
    %c0_7 = arith.constant 0 : index
    %10 = vector.load %arg4[%c0_6, %c0_7] : memref<128x128xbf16, #tpu.memory_space<vmem>>, vector<128x128xbf16>
    %cst_8 = arith.constant dense<0.000000e+00> : vector<8x128xf32>
    %11 = tpu.matmul %9, %10, %cst_8 {dimension_numbers = #tpu.dot_dimension_numbers<[1], [0], [0], [1], [0, 0, 1, 1], [], []>} : vector<8x128xbf16>, vector<128x128xbf16>, vector<8x128xf32> -> vector<8x128xf32>
    %c0_9 = arith.constant 0 : index
    %c0_10 = arith.constant 0 : index
    %12 = vector.load %arg5[%c0_9, %c0_10] : memref<1x128xf32, #tpu.memory_space<vmem>>, vector<1x128xf32>
    %13 = vector.broadcast %12 : vector<1x128xf32> to vector<8x128xf32>
    %14 = arith.addf %11, %13 : vector<8x128xf32>
    %cst_11 = arith.constant 0.000000e+00 : f32
    %15 = vector.broadcast %cst_11 : f32 to vector<8x128xf32>
    %16 = arith.maximumf %14, %15 : vector<8x128xf32>
    %17 = arith.truncf %16 : vector<8x128xf32> to vector<8x128xbf16>
    %c0_12 = arith.constant 0 : index
    %c0_13 = arith.constant 0 : index
    %18 = vector.load %arg6[%c0_12, %c0_13] : memref<128x128xbf16, #tpu.memory_space<vmem>>, vector<128x128xbf16>
    %cst_14 = arith.constant dense<0.000000e+00> : vector<8x128xf32>
    %19 = tpu.matmul %17, %18, %cst_14 {dimension_numbers = #tpu.dot_dimension_numbers<[1], [0], [0], [1], [0, 0, 1, 1], [], []>} : vector<8x128xbf16>, vector<128x128xbf16>, vector<8x128xf32> -> vector<8x128xf32>
    %c0_15 = arith.constant 0 : index
    %c0_16 = arith.constant 0 : index
    %20 = vector.load %arg7[%c0_15, %c0_16] : memref<1x128xf32, #tpu.memory_space<vmem>>, vector<1x128xf32>
    %21 = vector.broadcast %20 : vector<1x128xf32> to vector<8x128xf32>
    %22 = arith.addf %19, %21 : vector<8x128xf32>
    %23 = vector.extract_strided_slice %22 {offsets = [0, 0], sizes = [8, 10], strides = [1, 1]} : vector<8x128xf32> to vector<8x10xf32>
    %24 = arith.truncf %23 : vector<8x10xf32> to vector<8x10xbf16>
    %c0_17 = arith.constant 0 : index
    %c0_18 = arith.constant 0 : index
    %25 = vector.load %arg8[%c0_17, %c0_18] : memref<8x10xbf16, #tpu.memory_space<vmem>>, vector<8x10xbf16>
    tpu.vector_store %arg8[%c0_17, %c0_18], %24 {strides = array<i32>} : memref<8x10xbf16, #tpu.memory_space<vmem>>, vector<8x10xbf16>,
    return
  }
  func.func @transform_0(%arg0: i32) -> (i32, i32) {
    %c0_i32 = arith.constant 0 : i32
    %c0_i32_0 = arith.constant 0 : i32
    return %arg0, %c0_i32 : i32, i32
  }
  func.func @transform_1(%arg0: i32) -> (i32, i32) {
    %c0_i32 = arith.constant 0 : i32
    %c0_i32_0 = arith.constant 0 : i32
    %c0_i32_1 = arith.constant 0 : i32
    return %c0_i32, %c0_i32_0 : i32, i32
  }
  func.func @transform_2(%arg0: i32) -> (i32, i32) {
    %c0_i32 = arith.constant 0 : i32
    %c0_i32_0 = arith.constant 0 : i32
    %c0_i32_1 = arith.constant 0 : i32
    return %c0_i32, %c0_i32_0 : i32, i32
  }
  func.func @transform_3(%arg0: i32) -> (i32, i32) {
    %c0_i32 = arith.constant 0 : i32
    %c0_i32_0 = arith.constant 0 : i32
    %c0_i32_1 = arith.constant 0 : i32
    return %c0_i32, %c0_i32_0 : i32, i32
  }
  func.func @transform_4(%arg0: i32) -> (i32, i32) {
    %c0_i32 = arith.constant 0 : i32
    %c0_i32_0 = arith.constant 0 : i32
    %c0_i32_1 = arith.constant 0 : i32
    return %c0_i32, %c0_i32_0 : i32, i32
  }
  func.func @transform_5(%arg0: i32) -> (i32, i32) {
    %c0_i32 = arith.constant 0 : i32
    %c0_i32_0 = arith.constant 0 : i32
    %c0_i32_1 = arith.constant 0 : i32
    return %c0_i32, %c0_i32_0 : i32, i32
  }
  func.func @transform_6(%arg0: i32) -> (i32, i32) {
    %c0_i32 = arith.constant 0 : i32
    %c0_i32_0 = arith.constant 0 : i32
    %c0_i32_1 = arith.constant 0 : i32
    return %c0_i32, %c0_i32_0 : i32, i32
  }
  func.func @transform_7(%arg0: i32) -> (i32, i32) {
    %c0_i32 = arith.constant 0 : i32
    %c0_i32_0 = arith.constant 0 : i32
    return %arg0, %c0_i32 : i32, i32
  }
}

</mosaic_0001>

<llo_original>
// kernel: tpu_custom_call.1
$region0: #{tpu_custom_call.1}
  #allocation0 [shape = 'u32[]', space=smem, size = 0x4, offset = 0x4, fixed_abs, tag = 'smem constant byte address 0x4 - core index']
  #allocation1 [shape = 'u32[144,128]{1,0:T(1,128)}', space=vmem, size = 0x12000, scoped, tag = 'internal scratch']
  %s0 = inlined_call_operand.hbm [shape: f32[8,34], index: 0, kind: input, shape index: {}]
  %s1 = inlined_call_operand.hbm [shape: bf16[34,128], index: 1, kind: input, shape index: {}]
  %s2 = inlined_call_operand.vmem [shape: f32[1,128], index: 2, kind: input, shape index: {}]
  %s3 = inlined_call_operand.hbm [shape: bf16[128,128], index: 3, kind: input, shape index: {}]
  %s4 = inlined_call_operand.vmem [shape: f32[1,128], index: 4, kind: input, shape index: {}]
  %s5 = inlined_call_operand.hbm [shape: bf16[128,128], index: 5, kind: input, shape index: {}]
  %s6 = inlined_call_operand.vmem [shape: f32[1,128], index: 6, kind: input, shape index: {}]
  %s7 = inlined_call_operand.hbm [shape: bf16[8,10], index: 7, kind: output, shape index: {}]
  %s8 = sld [smem:[#allocation0]]
  $region54: #{tpu_custom_call.1} parent=0
    _
  %s10 = ssub.s32 1, %s8
  %s11 = scalar_select 0, %s10, %s8
  $region1: #{tpu_custom_call.1} parent=0
    #allocation2 [shape = 'u8[4096]{0}', space=vmem, size = 0x1000, scoped, tag = 'input window, operand 0, single buffered']
    #allocation3 [shape = 's32[1]{0}', space=sflag, size = 0x4, scoped, tag = 'scoped memory for tpu_custom_call.1']
    #allocation4 [shape = 's32[1]{0}', space=sflag, size = 0x4, scoped, tag = 'scoped memory for tpu_custom_call.1']
    #allocation5 [shape = 'u8[10240]{0}', space=vmem, size = 0x2800, scoped, tag = 'input window, operand 1, single buffered']
    #allocation6 [shape = 's32[1]{0}', space=sflag, size = 0x4, scoped, tag = 'scoped memory for tpu_custom_call.1']
    #allocation7 [shape = 'u8[32768]{0}', space=vmem, size = 0x8000, scoped, tag = 'input window, operand 3, single buffered']
    #allocation8 [shape = 'u8[32768]{0}', space=vmem, size = 0x8000, scoped, tag = 'input window, operand 5, single buffered']
    #allocation9 [shape = 's32[1]{0}', space=sflag, size = 0x4, scoped, tag = 'scoped memory for tpu_custom_call.1']
    #allocation10 [shape = 'u8[2048]{0}', space=vmem, size = 0x800, scoped, tag = 'output window, operand 0, single buffered']
    %12 = vsyncpa [#allocation3], 0
    %13 = vsyncpa [#allocation6], 0
    %14 = vsyncpa [#allocation9], 0
    %15 = vsyncpa [#allocation4], 0
    // Predicated region
    $region2: #{tpu_custom_call.1} parent=1 // pred_check
      _
    $region3: #{tpu_custom_call.1} parent=1 // pred_check_branch
      %17 = sbr.rel (0) target = $region5
    $region4: #{tpu_custom_call.1} parent=1 // pred_region
      %s19 = ssub.s32 128, 128
      %20 = vsyncadd [#allocation3], %s19
      %s22 = sshll.u32 [#allocation2], 4
      %s23 = int_to_ptr.vmem [resolvable:$true] %s22
      %25 = dma.hbm_to_vmem [thread:$0]  %s0, 128, %s23, [#allocation3]
    $region5: #{tpu_custom_call.1} parent=1 // pred_fallthru
      _
    // Predicated region
    $region6: #{tpu_custom_call.1} parent=1 // pred_check
      _
    $region7: #{tpu_custom_call.1} parent=1 // pred_check_branch
      %27 = sbr.rel (0) target = $region9
    $region8: #{tpu_custom_call.1} parent=1 // pred_region
      %s29 = ssub.s32 320, 320
      %30 = vsyncadd [#allocation6], %s29
      %s31 = sshll.u32 [#allocation5], 4
      %s32 = int_to_ptr.vmem [resolvable:$true] %s31
      %37 = dma.hbm_to_vmem [thread:$0]  %s1, 320, %s32, [#allocation6], 64, 64, 4
    $region9: #{tpu_custom_call.1} parent=1 // pred_fallthru
      _
    // Predicated region
    $region10: #{tpu_custom_call.1} parent=1 // pred_check
      _
    $region11: #{tpu_custom_call.1} parent=1 // pred_check_branch
      %39 = sbr.rel (0) target = $region13
    $region12: #{tpu_custom_call.1} parent=1 // pred_region
      _
    $region13: #{tpu_custom_call.1} parent=1 // pred_fallthru
      _
    // Predicated region
    $region14: #{tpu_custom_call.1} parent=1 // pred_check
      _
    $region15: #{tpu_custom_call.1} parent=1 // pred_check_branch
      %41 = sbr.rel (0) target = $region17
    $region16: #{tpu_custom_call.1} parent=1 // pred_region
      %s43 = ssub.s32 1024, 1024
      %44 = vsyncadd [#allocation6], %s43
      %s45 = sshll.u32 [#allocation7], 4
      %s46 = int_to_ptr.vmem [resolvable:$true] %s45
      %51 = dma.hbm_to_vmem [thread:$0]  %s3, 1024, %s46, [#allocation6], 64, 64, 4
    $region17: #{tpu_custom_call.1} parent=1 // pred_fallthru
      _
    // Predicated region
    $region18: #{tpu_custom_call.1} parent=1 // pred_check
      _
    $region19: #{tpu_custom_call.1} parent=1 // pred_check_branch
      %53 = sbr.rel (0) target = $region21
    $region20: #{tpu_custom_call.1} parent=1 // pred_region
      _
    $region21: #{tpu_custom_call.1} parent=1 // pred_fallthru
      _
    // Predicated region
    $region22: #{tpu_custom_call.1} parent=1 // pred_check
      _
    $region23: #{tpu_custom_call.1} parent=1 // pred_check_branch
      %55 = sbr.rel (0) target = $region25
    $region24: #{tpu_custom_call.1} parent=1 // pred_region
      %s57 = ssub.s32 1024, 1024
      %58 = vsyncadd [#allocation9], %s57
      %s59 = sshll.u32 [#allocation8], 4
      %s60 = int_to_ptr.vmem [resolvable:$true] %s59
      %65 = dma.hbm_to_vmem [thread:$0]  %s5, 1024, %s60, [#allocation9], 64, 64, 4
    $region25: #{tpu_custom_call.1} parent=1 // pred_fallthru
      _
    // Predicated region
    $region26: #{tpu_custom_call.1} parent=1 // pred_check
      _
    $region27: #{tpu_custom_call.1} parent=1 // pred_check_branch
      %67 = sbr.rel (0) target = $region29
    $region28: #{tpu_custom_call.1} parent=1 // pred_region
      _
    $region29: #{tpu_custom_call.1} parent=1 // pred_fallthru
      _
    // Predicated region
    $region30: #{tpu_custom_call.1} parent=1 // pred_check
      _
    $region31: #{tpu_custom_call.1} parent=1 // pred_check_branch
      %69 = sbr.rel (0) target = $region33
    $region32: #{tpu_custom_call.1} parent=1 // pred_region
      %70 = dma.done [#allocation3], 128
    $region33: #{tpu_custom_call.1} parent=1 // pred_fallthru
      _
    // Predicated region
    $region34: #{tpu_custom_call.1} parent=1 // pred_check
      _
    $region35: #{tpu_custom_call.1} parent=1 // pred_check_branch
      %72 = sbr.rel (0) target = $region37
    $region36: #{tpu_custom_call.1} parent=1 // pred_region
      %73 = dma.done [#allocation6], 320
    $region37: #{tpu_custom_call.1} parent=1 // pred_fallthru
      _
    // Predicated region
    $region38: #{tpu_custom_call.1} parent=1 // pred_check
      _
    $region39: #{tpu_custom_call.1} parent=1 // pred_check_branch
      %75 = sbr.rel (0) target = $region41
    $region40: #{tpu_custom_call.1} parent=1 // pred_region
      %76 = dma.done [#allocation6], 1024
    $region41: #{tpu_custom_call.1} parent=1 // pred_fallthru
      _
    // Predicated region
    $region42: #{tpu_custom_call.1} parent=1 // pred_check
      _
    $region43: #{tpu_custom_call.1} parent=1 // pred_check_branch
      %78 = sbr.rel (0) target = $region45
    $region44: #{tpu_custom_call.1} parent=1 // pred_region
      %79 = dma.done [#allocation9], 1024
    $region45: #{tpu_custom_call.1} parent=1 // pred_fallthru
      _
    %v81 = vld [vmem:[#allocation2] sm:$0xff]
    %v82 = vpack.c.bf16 %v81, %v81
    %v83 = vld [vmem:[#allocation5] sm:$0xf]
    %v84 = vld [vmem:[#allocation5 + $0x4] sm:$0xf]
    %v85 = vld [vmem:[#allocation5 + $0x8] sm:$0xf]
    %v86 = vld [vmem:[#allocation5 + $0xc] sm:$0xf]
    %v87 = vld [vmem:[#allocation5 + $0x10] sm:$0x1]
    %v88 = vld [vmem:[%s2] sm:$0x1]
    %v90 = vlaneseq
    %v91 = vshrl.u32 %v90, 7
    %v92 = vsub.s32 0, %v91
    %v93 = vrot.slane %v88, %v92
    %v100 = vunpack.c.l.b16 %v83
    %v101 = vunpack.c.l.b16 %v84
    %v102 = vunpack.c.l.b16 %v85
    %v103 = vunpack.c.l.b16 %v86
    %v104 = vunpack.c.l.b16 %v87
    %v105 = vpack.c.b16 %v101, %v100
    %v106 = vpack.c.b16 %v103, %v102
    %v107 = vpack.c.b16 %v104, %v104
    %vm110 = vcmask 277504
    %v112 = vsel %vm110, %v82, 0
    %vm114 = vcmask 1040384
    %v116 = vsel %vm114, %v107, 0
    %118 = vmatprep.subr.bf16.mxu0 0
    %119 = vmatpush1.bf16.msra.mxu0 0
    %120 = vmatprep.subr.bf16.mxu0 0
    %121 = vmatpush1.bf16.msra.mxu0 0
    %122 = vmatprep.subr.bf16.mxu0 0
    %123 = vmatpush1.bf16.msra.mxu0 0
    %124 = vmatprep.subr.bf16.mxu0 0
    %125 = vmatpush1.bf16.msra.mxu0 0
    %126 = vmatprep.subr.bf16.mxu0 0
    %127 = vmatpush1.bf16.msra.mxu0 0
    %128 = vmatprep.subr.bf16.mxu0 0
    %129 = vmatpush1.bf16.msra.mxu0 %v116
    %130 = vmatprep.subr.bf16.mxu0 0
    %131 = vmatpush1.bf16.msra.mxu0 %v106
    %132 = vmatprep.subr.bf16.mxu0 0
    %133 = vmatpush1.bf16.msra.mxu0 %v105
    %134 = vmatprep.subr.bf16.mxu0 0
    %135 = vmatpush2.bf16.msra.mxu0 0
    %136 = vmatprep.subr.bf16.mxu0 0
    %137 = vmatpush2.bf16.msra.mxu0 0
    %138 = vmatprep.subr.bf16.mxu0 0
    %139 = vmatpush2.bf16.msra.mxu0 0
    %140 = vmatprep.subr.bf16.mxu0 0
    %141 = vmatpush2.bf16.msra.mxu0 0
    %142 = vmatprep.subr.bf16.mxu0 0
    %143 = vmatpush2.bf16.msra.mxu0 0
    %144 = vmatprep.subr.bf16.mxu0 0
    %145 = vmatpush2.bf16.msra.mxu0 0
    %146 = vmatprep.subr.bf16.mxu0 0
    %147 = vmatpush2.bf16.msra.mxu0 0
    %148 = vmatprep.subr.bf16.mxu0 0
    %149 = vmatpush2.bf16.msra.mxu0 0
    %150 = vmatprep.mubr.bf16.mxu0 0
    %151 = vmatmul.mubr.bf16.gmra.mxu0 %v112
    %v152 = vpop.f32.mrf.mxu0
    %v153 = vadd.f32 %v93, %v152
    %v154 = vpop.f32.mrf.mxu0
    %v155 = vpop.f32.mrf.mxu0
    %v156 = vpop.f32.mrf.mxu0
    %157 = vdwg.mxu0
    %v158 = vmax.f32 %v153, 0.0
    %v159 = vpack.c.bf16 %v158, %v158
    %v160 = vld [vmem:[#allocation7] sm:$0xf]
    %v161 = vld [vmem:[#allocation7 + $0x4] sm:$0xf]
    %v162 = vld [vmem:[#allocation7 + $0x8] sm:$0xf]
    %v163 = vld [vmem:[#allocation7 + $0xc] sm:$0xf]
    %v164 = vld [vmem:[#allocation7 + $0x10] sm:$0xf]
    %v165 = vld [vmem:[#allocation7 + $0x14] sm:$0xf]
    %v166 = vld [vmem:[#allocation7 + $0x18] sm:$0xf]
    %v167 = vld [vmem:[#allocation7 + $0x1c] sm:$0xf]
    %v168 = vld [vmem:[#allocation7 + $0x20] sm:$0xf]
    %v169 = vld [vmem:[#allocation7 + $0x24] sm:$0xf]
    %v170 = vld [vmem:[#allocation7 + $0x28] sm:$0xf]
    %v171 = vld [vmem:[#allocation7 + $0x2c] sm:$0xf]
    %v172 = vld [vmem:[#allocation7 + $0x30] sm:$0xf]
    %v173 = vld [vmem:[#allocation7 + $0x34] sm:$0xf]
    %v174 = vld [vmem:[#allocation7 + $0x38] sm:$0xf]
    %v175 = vld [vmem:[#allocation7 + $0x3c] sm:$0xf]
    %v176 = vld [vmem:[%s4] sm:$0x1]
    %v178 = vlaneseq
    %v179 = vshrl.u32 %v178, 7
    %v180 = vsub.s32 0, %v179
    %v181 = vrot.slane %v176, %v180
    %v199 = vunpack.c.l.b16 %v160
    %v200 = vunpack.c.l.b16 %v161
    %v201 = vunpack.c.l.b16 %v162
    %v202 = vunpack.c.l.b16 %v163
    %v203 = vunpack.c.l.b16 %v164
    %v204 = vunpack.c.l.b16 %v165
    %v205 = vunpack.c.l.b16 %v166
    %v206 = vunpack.c.l.b16 %v167
    %v207 = vunpack.c.l.b16 %v168
    %v208 = vunpack.c.l.b16 %v169
    %v209 = vunpack.c.l.b16 %v170
    %v210 = vunpack.c.l.b16 %v171
    %v211 = vunpack.c.l.b16 %v172
    %v212 = vunpack.c.l.b16 %v173
    %v213 = vunpack.c.l.b16 %v174
    %v214 = vunpack.c.l.b16 %v175
    %v215 = vpack.c.b16 %v200, %v199
    %v216 = vpack.c.b16 %v202, %v201
    %v217 = vpack.c.b16 %v204, %v203
    %v218 = vpack.c.b16 %v206, %v205
    %v219 = vpack.c.b16 %v208, %v207
    %v220 = vpack.c.b16 %v210, %v209
    %v221 = vpack.c.b16 %v212, %v211
    %v222 = vpack.c.b16 %v214, %v213
    %231 = vmatprep.subr.bf16.mxu0 0
    %232 = vmatpush1.bf16.msra.mxu0 %v222
    %233 = vmatprep.subr.bf16.mxu0 0
    %234 = vmatpush1.bf16.msra.mxu0 %v221
    %235 = vmatprep.subr.bf16.mxu0 0
    %236 = vmatpush1.bf16.msra.mxu0 %v220
    %237 = vmatprep.subr.bf16.mxu0 0
    %238 = vmatpush1.bf16.msra.mxu0 %v219
    %239 = vmatprep.subr.bf16.mxu0 0
    %240 = vmatpush1.bf16.msra.mxu0 %v218
    %241 = vmatprep.subr.bf16.mxu0 0
    %242 = vmatpush1.bf16.msra.mxu0 %v217
    %243 = vmatprep.subr.bf16.mxu0 0
    %244 = vmatpush1.bf16.msra.mxu0 %v216
    %245 = vmatprep.subr.bf16.mxu0 0
    %246 = vmatpush1.bf16.msra.mxu0 %v215
    %247 = vmatprep.subr.bf16.mxu0 0
    %248 = vmatpush2.bf16.msra.mxu0 0
    %249 = vmatprep.subr.bf16.mxu0 0
    %250 = vmatpush2.bf16.msra.mxu0 0
    %251 = vmatprep.subr.bf16.mxu0 0
    %252 = vmatpush2.bf16.msra.mxu0 0
    %253 = vmatprep.subr.bf16.mxu0 0
    %254 = vmatpush2.bf16.msra.mxu0 0
    %255 = vmatprep.subr.bf16.mxu0 0
    %256 = vmatpush2.bf16.msra.mxu0 0
    %257 = vmatprep.subr.bf16.mxu0 0
    %258 = vmatpush2.bf16.msra.mxu0 0
    %259 = vmatprep.subr.bf16.mxu0 0
    %260 = vmatpush2.bf16.msra.mxu0 0
    %261 = vmatprep.subr.bf16.mxu0 0
    %262 = vmatpush2.bf16.msra.mxu0 0
    %263 = vmatprep.mubr.bf16.mxu0 0
    %264 = vmatmul.mubr.bf16.gmra.mxu0 %v159
    %v265 = vpop.f32.mrf.mxu0
    %v266 = vadd.f32 %v181, %v265
    %v267 = vpop.f32.mrf.mxu0
    %v268 = vpop.f32.mrf.mxu0
    %v269 = vpop.f32.mrf.mxu0
    %270 = vdwg.mxu0
    %v271 = vmax.f32 %v266, 0.0
    %v272 = vpack.c.bf16 %v271, %v271
    %v273 = vld [vmem:[#allocation8] sm:$0xf]
    %v274 = vld [vmem:[#allocation8 + $0x4] sm:$0xf]
    %v275 = vld [vmem:[#allocation8 + $0x8] sm:$0xf]
    %v276 = vld [vmem:[#allocation8 + $0xc] sm:$0xf]
    %v277 = vld [vmem:[#allocation8 + $0x10] sm:$0xf]
    %v278 = vld [vmem:[#allocation8 + $0x14] sm:$0xf]
    %v279 = vld [vmem:[#allocation8 + $0x18] sm:$0xf]
    %v280 = vld [vmem:[#allocation8 + $0x1c] sm:$0xf]
    %v281 = vld [vmem:[#allocation8 + $0x20] sm:$0xf]
    %v282 = vld [vmem:[#allocation8 + $0x24] sm:$0xf]
    %v283 = vld [vmem:[#allocation8 + $0x28] sm:$0xf]
    %v284 = vld [vmem:[#allocation8 + $0x2c] sm:$0xf]
    %v285 = vld [vmem:[#allocation8 + $0x30] sm:$0xf]
    %v286 = vld [vmem:[#allocation8 + $0x34] sm:$0xf]
    %v287 = vld [vmem:[#allocation8 + $0x38] sm:$0xf]
    %v288 = vld [vmem:[#allocation8 + $0x3c] sm:$0xf]
    %v289 = vld [vmem:[%s6] sm:$0x1]
    %v291 = vlaneseq
    %v292 = vshrl.u32 %v291, 7
    %v293 = vsub.s32 0, %v292
    %v294 = vrot.slane %v289, %v293
    %v312 = vunpack.c.l.b16 %v273
    %v313 = vunpack.c.l.b16 %v274
    %v314 = vunpack.c.l.b16 %v275
    %v315 = vunpack.c.l.b16 %v276
    %v316 = vunpack.c.l.b16 %v277
    %v317 = vunpack.c.l.b16 %v278
    %v318 = vunpack.c.l.b16 %v279
    %v319 = vunpack.c.l.b16 %v280
    %v320 = vunpack.c.l.b16 %v281
    %v321 = vunpack.c.l.b16 %v282
    %v322 = vunpack.c.l.b16 %v283
    %v323 = vunpack.c.l.b16 %v284
    %v324 = vunpack.c.l.b16 %v285
    %v325 = vunpack.c.l.b16 %v286
    %v326 = vunpack.c.l.b16 %v287
    %v327 = vunpack.c.l.b16 %v288
    %v328 = vpack.c.b16 %v313, %v312
    %v329 = vpack.c.b16 %v315, %v314
    %v330 = vpack.c.b16 %v317, %v316
    %v331 = vpack.c.b16 %v319, %v318
    %v332 = vpack.c.b16 %v321, %v320
    %v333 = vpack.c.b16 %v323, %v322
    %v334 = vpack.c.b16 %v325, %v324
    %v335 = vpack.c.b16 %v327, %v326
    %344 = vmatprep.subr.bf16.mxu0 0
    %345 = vmatpush1.bf16.msra.mxu0 %v335
    %346 = vmatprep.subr.bf16.mxu0 0
    %347 = vmatpush1.bf16.msra.mxu0 %v334
    %348 = vmatprep.subr.bf16.mxu0 0
    %349 = vmatpush1.bf16.msra.mxu0 %v333
    %350 = vmatprep.subr.bf16.mxu0 0
    %351 = vmatpush1.bf16.msra.mxu0 %v332
    %352 = vmatprep.subr.bf16.mxu0 0
    %353 = vmatpush1.bf16.msra.mxu0 %v331
    %354 = vmatprep.subr.bf16.mxu0 0
    %355 = vmatpush1.bf16.msra.mxu0 %v330
    %356 = vmatprep.subr.bf16.mxu0 0
    %357 = vmatpush1.bf16.msra.mxu0 %v329
    %358 = vmatprep.subr.bf16.mxu0 0
    %359 = vmatpush1.bf16.msra.mxu0 %v328
    %360 = vmatprep.subr.bf16.mxu0 0
    %361 = vmatpush2.bf16.msra.mxu0 0
    %362 = vmatprep.subr.bf16.mxu0 0
    %363 = vmatpush2.bf16.msra.mxu0 0
    %364 = vmatprep.subr.bf16.mxu0 0
    %365 = vmatpush2.bf16.msra.mxu0 0
    %366 = vmatprep.subr.bf16.mxu0 0
    %367 = vmatpush2.bf16.msra.mxu0 0
    %368 = vmatprep.subr.bf16.mxu0 0
    %369 = vmatpush2.bf16.msra.mxu0 0
    %370 = vmatprep.subr.bf16.mxu0 0
    %371 = vmatpush2.bf16.msra.mxu0 0
    %372 = vmatprep.subr.bf16.mxu0 0
    %373 = vmatpush2.bf16.msra.mxu0 0
    %374 = vmatprep.subr.bf16.mxu0 0
    %375 = vmatpush2.bf16.msra.mxu0 0
    %376 = vmatprep.mubr.bf16.mxu0 0
    %377 = vmatmul.mubr.bf16.gmra.mxu0 %v272
    %v378 = vpop.f32.mrf.mxu0
    %v379 = vadd.f32 %v294, %v378
    %v380 = vpop.f32.mrf.mxu0
    %v381 = vpop.f32.mrf.mxu0
    %v382 = vpop.f32.mrf.mxu0
    %383 = vdwg.mxu0
    %v384 = vpack.c.bf16 %v379, %v379
    %vm385 = vcmask 76800
    %386 = vst.msk [vmem:[#allocation10] sm:$0xf] %vm385, %v384
    // Predicated region
    $region46: #{tpu_custom_call.1} parent=1 // pred_check
      _
    $region47: #{tpu_custom_call.1} parent=1 // pred_check_branch
      %388 = sbr.rel (0) target = $region49
    $region48: #{tpu_custom_call.1} parent=1 // pred_region
      %s390 = ssub.s32 64, 64
      %391 = vsyncadd [#allocation4], %s390
      %s393 = sshll.u32 [#allocation10], 4
      %s394 = int_to_ptr.vmem [resolvable:$true] %s393
      %396 = dma.vmem_to_hbm [thread:$0]  %s394, 64, %s7, [#allocation4]
    $region49: #{tpu_custom_call.1} parent=1 // pred_fallthru
      _
    // Predicated region
    $region50: #{tpu_custom_call.1} parent=1 // pred_check
      _
    $region51: #{tpu_custom_call.1} parent=1 // pred_check_branch
      %398 = sbr.rel (0) target = $region53
    $region52: #{tpu_custom_call.1} parent=1 // pred_region
      %399 = dma.done [#allocation4], 64
    $region53: #{tpu_custom_call.1} parent=1 // pred_fallthru
      _
    %400 = vsyncpa [#allocation3], 1
    %401 = vsyncpa [#allocation6], 1
    %402 = vsyncpa [#allocation9], 1
    %403 = vsyncpa [#allocation4], 1

</llo_original>
